<compile_context>
chip_gen: v6e
topology: v6e:2x2x1
jax: 0.10.0
libtpu: 0.0.40
codegen_flags: <defaults>
</compile_context>

<pallas_src>
import functools

import jax
import jax.numpy as jnp
from jax.experimental import pallas as pl
from jax.experimental.pallas import tpu as pltpu


def _chunk_layernorm_kernel(x_ref, w_ref, b_ref, seg_ref, segT_ref, o_ref,
                            *, num_units, eps):
    # x_ref: (tb, bf)   w_ref/b_ref: (1, bf)   seg_ref: (bf, cb)   segT_ref: (cb, bf)
    x = x_ref[...].astype(jnp.float32)
    seg = seg_ref[...]
    segT = segT_ref[...]
    inv_n = jnp.float32(1.0 / num_units)

    # Per-chunk mean as an MXU segment reduction, broadcast back to lanes via segT.
    mean = jnp.dot(x, seg, preferred_element_type=jnp.float32) * inv_n        # (tb, cb)
    d = x - jnp.dot(mean, segT, preferred_element_type=jnp.float32)           # (tb, bf)
    # Biased variance, two-pass (robust for large |mean| / small std).
    var = jnp.dot(d * d, seg, preferred_element_type=jnp.float32) * inv_n     # (tb, cb)
    inv = jax.lax.rsqrt(var + eps)                                            # (tb, cb)

    # Fold affine weight into the broadcast matrix: (inv @ (segT*w))[r,f] =
    # inv[r, chunk(f)] * w[f]; the (cb, bf) multiply is tiny vs a full-tile one.
    w = w_ref[...].astype(jnp.float32)
    b = b_ref[...].astype(jnp.float32)
    scale_f = jnp.dot(inv, segT * w, preferred_element_type=jnp.float32)      # (tb, bf)
    o_ref[...] = (d * scale_f + b).astype(o_ref.dtype)


def _pick_chunk_tile(chunks, num_units, max_block_f):
    """Largest chunk-group cb dividing `chunks` with cb*num_units % 128 == 0 and
    <= max_block_f.  Falls back to cb = chunks (untiled lane axis)."""
    for cb in range(chunks, 0, -1):
        bf = cb * num_units
        if chunks % cb == 0 and bf % 128 == 0 and bf <= max_block_f:
            return cb
    return chunks


def chunk_layer_norm(x, weight, bias, *, chunks, num_units, eps=1e-5,
                     block_b=None, buffering=None):
    """x: (B, chunks*num_units); weight/bias: (chunks*num_units,). Same shape/dtype out."""
    B, F = x.shape
    assert F == chunks * num_units

    # ---- lane (feature) tiling over chunk groups --------------------------------
    MAX_BLOCK_F = 4096
    cb = _pick_chunk_tile(chunks, num_units, MAX_BLOCK_F)
    block_f = cb * num_units
    nf = F // block_f
    # If F is not a multiple of 128 we fall back to an untiled lane axis (block ==
    # full dim, legal); stores are then masked.  Padding F host-side would trade the
    # masked vst for an extra full HBM pass, so it is not done here.

    # ---- VMEM-aware batch tiling --------------------------------------------------
    try:
        vmem_cap = pltpu.get_tpu_info().vmem_capacity_bytes   # per TensorCore
    except Exception:
        vmem_cap = 64 << 20                                   # conservative (v7x)
    budget = min(vmem_cap // 2, 72 << 20)        # pipeline buffers + temporaries
    vmem_limit = min((vmem_cap * 3) // 4, 100 << 20)

    itemsize = jnp.dtype(x.dtype).itemsize
    # 2 in + 2 out pipeline buffers in x.dtype + ~5 full-tile f32 temporaries.
    bytes_per_row = block_f * (4 * itemsize + 20)
    auto_b = max(8, (budget // bytes_per_row) // 8 * 8)
    auto_b = min(auto_b, 4096)
    if block_b is None:
        block_b = auto_b
    if B >= 16:
        # Keep >= 2 batch blocks so both v7x TensorCores get work on the parallel axis.
        half = (((B + 1) // 2 + 7) // 8) * 8
        block_b = min(block_b, half)
    if block_b >= B:
        block_b = B                            # single block == full dim (any B legal)
    else:
        block_b = max(8, (block_b // 8) * 8)   # partial last block is clipped by Pallas
    nb = pl.cdiv(B, block_b)

    # ---- constant one-hot segment matrices (local to one chunk-group block) -------
    f_idx = jnp.arange(block_f)
    seg = (f_idx[:, None] // num_units == jnp.arange(cb)[None, :]).astype(jnp.float32)
    segT = seg.T
    w2 = weight.reshape(1, F)
    b2 = bias.reshape(1, F)

    x_spec_kwargs = {}
    if buffering is not None and buffering != 2:
        x_spec_kwargs["pipeline_mode"] = pl.Buffered(buffering)

    kernel = functools.partial(_chunk_layernorm_kernel, num_units=num_units, eps=eps)
    return pl.pallas_call(
        kernel,
        out_shape=jax.ShapeDtypeStruct((B, F), x.dtype),
        grid_spec=pltpu.PrefetchScalarGridSpec(
            num_scalar_prefetch=0,
            grid=(nb, nf),
            in_specs=[
                pl.BlockSpec((block_b, block_f), lambda i, j: (i, j), **x_spec_kwargs),
                pl.BlockSpec((1, block_f), lambda i, j: (0, j)),    # weight
                pl.BlockSpec((1, block_f), lambda i, j: (0, j)),    # bias
                pl.BlockSpec((block_f, cb), lambda i, j: (0, 0)),   # segment one-hot
                pl.BlockSpec((cb, block_f), lambda i, j: (0, 0)),   # its transpose
            ],
            out_specs=pl.BlockSpec((block_b, block_f), lambda i, j: (i, j),
                                   **x_spec_kwargs),
        ),
        compiler_params=pltpu.CompilerParams(
            dimension_semantics=("parallel", "parallel"),
            vmem_limit_bytes=int(vmem_limit),
        ),
    )(x, w2, b2, seg, segT)


def _reference(x, weight, bias, *, chunks, num_units, eps=1e-5):
    B = x.shape[0]
    x3 = x.reshape(B, chunks, num_units).astype(jnp.float32)
    mean = jnp.mean(x3, axis=-1, keepdims=True)
    var = jnp.mean((x3 - mean) ** 2, axis=-1, keepdims=True)
    y = ((x3 - mean) / jnp.sqrt(var + eps)).reshape(B, chunks * num_units)
    return y * weight + bias


if __name__ == "__main__":
    key = jax.random.PRNGKey(0)
    eps = 1e-5

    # Case 1: module-sized config (num_units=32, chunks=4, B=8).  Deterministic random
    # affine params to exercise the full (weight, bias) path.
    num_units, chunks, B = 32, 4, 8
    k1, k2, k3, key = jax.random.split(key, 4)
    x = jax.random.normal(k1, (B, chunks * num_units), dtype=jnp.float32)
    weight = 1.0 + 0.1 * jax.random.normal(k2, (chunks * num_units,), jnp.float32)
    bias = 0.1 * jax.random.normal(k3, (chunks * num_units,), jnp.float32)

    out = jax.block_until_ready(
        chunk_layer_norm(x, weight, bias, chunks=chunks, num_units=num_units, eps=eps))
    ref = _reference(x, weight, bias, chunks=chunks, num_units=num_units, eps=eps)
    assert out.shape == x.shape and out.dtype == x.dtype
    assert jnp.allclose(out, ref, atol=1e-5, rtol=1e-5), "case 1 mismatch vs reference"

    # Case 2: ragged batch (partial last block, no host-side padding) and F % 128 != 0.
    num_units2, chunks2, B2 = 24, 6, 20
    k4, key = jax.random.split(key)
    x2 = 3.0 + jax.random.normal(k4, (B2, chunks2 * num_units2), dtype=jnp.float32)
    w_ones = jnp.ones((chunks2 * num_units2,), jnp.float32)   # reset_parameters init
    b_zeros = jnp.zeros((chunks2 * num_units2,), jnp.float32)
    out2 = jax.block_until_ready(
        chunk_layer_norm(x2, w_ones, b_zeros, chunks=chunks2, num_units=num_units2, eps=eps))
    ref2 = _reference(x2, w_ones, b_zeros, chunks=chunks2, num_units=num_units2, eps=eps)
    assert jnp.allclose(out2, ref2, atol=1e-5, rtol=1e-5), "case 2 mismatch vs reference"

    print("KERNEL_OK")
</pallas_src>

<mosaic_0001>
module attributes {stable_mosaic.version = 11 : i64} {
  func.func @_chunk_layernorm_kernel(%arg0: i32, %arg1: i32, %arg2: memref<8x128xf32, #tpu.memory_space<vmem>>, %arg3: memref<1x128xf32, #tpu.memory_space<vmem>>, %arg4: memref<1x128xf32, #tpu.memory_space<vmem>>, %arg5: memref<128x4xf32, #tpu.memory_space<vmem>>, %arg6: memref<4x128xf32, #tpu.memory_space<vmem>>, %arg7: memref<8x128xf32, #tpu.memory_space<vmem>>) attributes {dimension_semantics = [#tpu.dimension_semantics<parallel>, #tpu.dimension_semantics<parallel>], iteration_bounds = array<i64: 1, 1>, scalar_prefetch = 0 : i64, scratch_operands = 0 : i64, tpu.core_type = #tpu.core_type<tc>, window_params = [{transform_indices = @transform_0, window_bounds = array<i64: 8, 128>}, {transform_indices = @transform_1, window_bounds = array<i64: 1, 128>}, {transform_indices = @transform_2, window_bounds = array<i64: 1, 128>}, {pipeline_mode = #tpu.pipeline_mode<synchronous>, transform_indices = @transform_3, window_bounds = array<i64: 128, 4>}, {pipeline_mode = #tpu.pipeline_mode<synchronous>, transform_indices = @transform_4, window_bounds = array<i64: 4, 128>}, {transform_indices = @transform_5, window_bounds = array<i64: 8, 128>}]} {
    %c0 = arith.constant 0 : index
    %c0_0 = arith.constant 0 : index
    %0 = vector.load %arg2[%c0, %c0_0] : memref<8x128xf32, #tpu.memory_space<vmem>>, vector<8x128xf32>
    %c0_1 = arith.constant 0 : index
    %c0_2 = arith.constant 0 : index
    %1 = vector.load %arg5[%c0_1, %c0_2] : memref<128x4xf32, #tpu.memory_space<vmem>>, vector<128x4xf32>
    %c0_3 = arith.constant 0 : index
    %c0_4 = arith.constant 0 : index
    %2 = vector.load %arg6[%c0_3, %c0_4] : memref<4x128xf32, #tpu.memory_space<vmem>>, vector<4x128xf32>
    %cst = arith.constant dense<0.000000e+00> : vector<8x4xf32>
    %3 = tpu.matmul %0, %1, %cst {dimension_numbers = #tpu.dot_dimension_numbers<[1], [0], [0], [1], [0, 0, 1, 1], [], []>} : vector<8x128xf32>, vector<128x4xf32>, vector<8x4xf32> -> vector<8x4xf32>
    %cst_5 = arith.constant 3.125000e-02 : f32
    %4 = vector.broadcast %cst_5 : f32 to vector<8x4xf32>
    %5 = arith.mulf %3, %4 : vector<8x4xf32>
    %cst_6 = arith.constant dense<0.000000e+00> : vector<8x128xf32>
    %6 = tpu.matmul %5, %2, %cst_6 {dimension_numbers = #tpu.dot_dimension_numbers<[1], [0], [0], [1], [0, 0, 1, 1], [], []>} : vector<8x4xf32>, vector<4x128xf32>, vector<8x128xf32> -> vector<8x128xf32>
    %7 = arith.subf %0, %6 : vector<8x128xf32>
    %8 = arith.mulf %7, %7 : vector<8x128xf32>
    %cst_7 = arith.constant dense<0.000000e+00> : vector<8x4xf32>
    %9 = tpu.matmul %8, %1, %cst_7 {dimension_numbers = #tpu.dot_dimension_numbers<[1], [0], [0], [1], [0, 0, 1, 1], [], []>} : vector<8x128xf32>, vector<128x4xf32>, vector<8x4xf32> -> vector<8x4xf32>
    %cst_8 = arith.constant 3.125000e-02 : f32
    %10 = vector.broadcast %cst_8 : f32 to vector<8x4xf32>
    %11 = arith.mulf %9, %10 : vector<8x4xf32>
    %cst_9 = arith.constant 9.99999974E-6 : f32
    %12 = vector.broadcast %cst_9 : f32 to vector<8x4xf32>
    %13 = arith.addf %11, %12 : vector<8x4xf32>
    %14 = math.rsqrt %13 : vector<8x4xf32>
    %c0_10 = arith.constant 0 : index
    %c0_11 = arith.constant 0 : index
    %15 = vector.load %arg3[%c0_10, %c0_11] : memref<1x128xf32, #tpu.memory_space<vmem>>, vector<1x128xf32>
    %c0_12 = arith.constant 0 : index
    %c0_13 = arith.constant 0 : index
    %16 = vector.load %arg4[%c0_12, %c0_13] : memref<1x128xf32, #tpu.memory_space<vmem>>, vector<1x128xf32>
    %17 = vector.broadcast %15 : vector<1x128xf32> to vector<4x128xf32>
    %18 = arith.mulf %2, %17 : vector<4x128xf32>
    %cst_14 = arith.constant dense<0.000000e+00> : vector<8x128xf32>
    %19 = tpu.matmul %14, %18, %cst_14 {dimension_numbers = #tpu.dot_dimension_numbers<[1], [0], [0], [1], [0, 0, 1, 1], [], []>} : vector<8x4xf32>, vector<4x128xf32>, vector<8x128xf32> -> vector<8x128xf32>
    %20 = arith.mulf %7, %19 : vector<8x128xf32>
    %21 = vector.broadcast %16 : vector<1x128xf32> to vector<8x128xf32>
    %22 = arith.addf %20, %21 : vector<8x128xf32>
    %c0_15 = arith.constant 0 : index
    %c0_16 = arith.constant 0 : index
    %23 = vector.load %arg7[%c0_15, %c0_16] : memref<8x128xf32, #tpu.memory_space<vmem>>, vector<8x128xf32>
    tpu.vector_store %arg7[%c0_15, %c0_16], %22 {strides = array<i32>} : memref<8x128xf32, #tpu.memory_space<vmem>>, vector<8x128xf32>,
    return
  }
  func.func @transform_0(%arg0: i32, %arg1: i32) -> (i32, i32) {
    %c0_i32 = arith.constant 0 : i32
    return %arg0, %arg1 : i32, i32
  }
  func.func @transform_1(%arg0: i32, %arg1: i32) -> (i32, i32) {
    %c0_i32 = arith.constant 0 : i32
    %c0_i32_0 = arith.constant 0 : i32
    return %c0_i32, %arg1 : i32, i32
  }
  func.func @transform_2(%arg0: i32, %arg1: i32) -> (i32, i32) {
    %c0_i32 = arith.constant 0 : i32
    %c0_i32_0 = arith.constant 0 : i32
    return %c0_i32, %arg1 : i32, i32
  }
  func.func @transform_3(%arg0: i32, %arg1: i32) -> (i32, i32) {
    %c0_i32 = arith.constant 0 : i32
    %c0_i32_0 = arith.constant 0 : i32
    %c0_i32_1 = arith.constant 0 : i32
    return %c0_i32, %c0_i32_0 : i32, i32
  }
  func.func @transform_4(%arg0: i32, %arg1: i32) -> (i32, i32) {
    %c0_i32 = arith.constant 0 : i32
    %c0_i32_0 = arith.constant 0 : i32
    %c0_i32_1 = arith.constant 0 : i32
    return %c0_i32, %c0_i32_0 : i32, i32
  }
  func.func @transform_5(%arg0: i32, %arg1: i32) -> (i32, i32) {
    %c0_i32 = arith.constant 0 : i32
    return %arg0, %arg1 : i32, i32
  }
}

</mosaic_0001>

<llo_original>
// kernel: tpu_custom_call.1
$region0: #{tpu_custom_call.1}
  #allocation0 [shape = 'u32[]', space=smem, size = 0x4, offset = 0x4, fixed_abs, tag = 'smem constant byte address 0x4 - core index']
  #allocation1 [shape = 'u32[144,128]{1,0:T(1,128)}', space=vmem, size = 0x12000, scoped, tag = 'internal scratch']
  %s0 = inlined_call_operand.vmem [shape: f32[8,128], index: 0, kind: input, shape index: {}]
  %s1 = inlined_call_operand.vmem [shape: f32[1,128], index: 1, kind: input, shape index: {}]
  %s2 = inlined_call_operand.vmem [shape: f32[1,128], index: 2, kind: input, shape index: {}]
  %s3 = inlined_call_operand.vmem [shape: f32[128,4], index: 3, kind: input, shape index: {}]
  %s4 = inlined_call_operand.vmem [shape: f32[4,128], index: 4, kind: input, shape index: {}]
  %s5 = inlined_call_operand.hbm [shape: f32[8,128], index: 5, kind: output, shape index: {}]
  %s6 = sld [smem:[#allocation0]]
  $region30: #{tpu_custom_call.1} parent=0
    _
  %s8 = ssub.s32 1, %s6
  %s9 = scalar_select 0, %s8, %s6
  $region1: #{tpu_custom_call.1} parent=0
    #allocation2 [shape = 'u8[4096]{0}', space=vmem, size = 0x1000, scoped, tag = 'output window, operand 0, single buffered']
    #allocation3 [shape = 's32[1]{0}', space=sflag, size = 0x4, scoped, tag = 'scoped memory for tpu_custom_call.1']
    %10 = vsyncpa [#allocation3], 0
    // Predicated region
    $region2: #{tpu_custom_call.1} parent=1 // pred_check
      _
    $region3: #{tpu_custom_call.1} parent=1 // pred_check_branch
      %12 = sbr.rel (0) target = $region5
    $region4: #{tpu_custom_call.1} parent=1 // pred_region
      _
    $region5: #{tpu_custom_call.1} parent=1 // pred_fallthru
      _
    // Predicated region
    $region6: #{tpu_custom_call.1} parent=1 // pred_check
      _
    $region7: #{tpu_custom_call.1} parent=1 // pred_check_branch
      %14 = sbr.rel (0) target = $region9
    $region8: #{tpu_custom_call.1} parent=1 // pred_region
      _
    $region9: #{tpu_custom_call.1} parent=1 // pred_fallthru
      _
    // Predicated region
    $region10: #{tpu_custom_call.1} parent=1 // pred_check
      _
    $region11: #{tpu_custom_call.1} parent=1 // pred_check_branch
      %16 = sbr.rel (0) target = $region13
    $region12: #{tpu_custom_call.1} parent=1 // pred_region
      _
    $region13: #{tpu_custom_call.1} parent=1 // pred_fallthru
      _
    // Predicated region
    $region14: #{tpu_custom_call.1} parent=1 // pred_check
      _
    $region15: #{tpu_custom_call.1} parent=1 // pred_check_branch
      %18 = sbr.rel (0) target = $region17
    $region16: #{tpu_custom_call.1} parent=1 // pred_region
      _
    $region17: #{tpu_custom_call.1} parent=1 // pred_fallthru
      _
    // Predicated region
    $region18: #{tpu_custom_call.1} parent=1 // pred_check
      _
    $region19: #{tpu_custom_call.1} parent=1 // pred_check_branch
      %20 = sbr.rel (0) target = $region21
    $region20: #{tpu_custom_call.1} parent=1 // pred_region
      _
    $region21: #{tpu_custom_call.1} parent=1 // pred_fallthru
      _
    %v21 = vld [vmem:[%s0] sm:$0xff]
    %v22 = vld [vmem:[%s3] sm:$0xff]
    %v23 = vld [vmem:[%s3 + $0x8] sm:$0xff]
    %v24 = vld [vmem:[%s3 + $0x10] sm:$0xff]
    %v25 = vld [vmem:[%s3 + $0x18] sm:$0xff]
    %v26 = vld [vmem:[%s3 + $0x20] sm:$0xff]
    %v27 = vld [vmem:[%s3 + $0x28] sm:$0xff]
    %v28 = vld [vmem:[%s3 + $0x30] sm:$0xff]
    %v29 = vld [vmem:[%s3 + $0x38] sm:$0xff]
    %v30 = vld [vmem:[%s3 + $0x40] sm:$0xff]
    %v31 = vld [vmem:[%s3 + $0x48] sm:$0xff]
    %v32 = vld [vmem:[%s3 + $0x50] sm:$0xff]
    %v33 = vld [vmem:[%s3 + $0x58] sm:$0xff]
    %v34 = vld [vmem:[%s3 + $0x60] sm:$0xff]
    %v35 = vld [vmem:[%s3 + $0x68] sm:$0xff]
    %v36 = vld [vmem:[%s3 + $0x70] sm:$0xff]
    %v37 = vld [vmem:[%s3 + $0x78] sm:$0xff]
    %v38 = vld [vmem:[%s4] sm:$0xf]
    %39 = vmatprep.subr.mxu0 0.0
    %40 = vmatpush1.msra.mxu0 %v37
    %41 = vmatprep.subr.mxu0 0.0
    %42 = vmatpush1.msra.mxu0 %v36
    %43 = vmatprep.subr.mxu0 0.0
    %44 = vmatpush1.msra.mxu0 %v35
    %45 = vmatprep.subr.mxu0 0.0
    %46 = vmatpush1.msra.mxu0 %v34
    %47 = vmatprep.subr.mxu0 0.0
    %48 = vmatpush1.msra.mxu0 %v33
    %49 = vmatprep.subr.mxu0 0.0
    %50 = vmatpush1.msra.mxu0 %v32
    %51 = vmatprep.subr.mxu0 0.0
    %52 = vmatpush1.msra.mxu0 %v31
    %53 = vmatprep.subr.mxu0 0.0
    %54 = vmatpush1.msra.mxu0 %v30
    %55 = vmatprep.subr.mxu0 0.0
    %56 = vmatpush1.msra.mxu0 %v29
    %57 = vmatprep.subr.mxu0 0.0
    %58 = vmatpush1.msra.mxu0 %v28
    %59 = vmatprep.subr.mxu0 0.0
    %60 = vmatpush1.msra.mxu0 %v27
    %61 = vmatprep.subr.mxu0 0.0
    %62 = vmatpush1.msra.mxu0 %v26
    %63 = vmatprep.subr.mxu0 0.0
    %64 = vmatpush1.msra.mxu0 %v25
    %65 = vmatprep.subr.mxu0 0.0
    %66 = vmatpush1.msra.mxu0 %v24
    %67 = vmatprep.subr.mxu0 0.0
    %68 = vmatpush1.msra.mxu0 %v23
    %69 = vmatprep.subr.mxu0 0.0
    %70 = vmatpush1.msra.mxu0 %v22
    %71 = vmatprep.subr.mxu0 0.0
    %72 = vmatpush2.msra.mxu0 0.0
    %73 = vmatprep.subr.mxu0 0.0
    %74 = vmatpush2.msra.mxu0 0.0
    %75 = vmatprep.subr.mxu0 0.0
    %76 = vmatpush2.msra.mxu0 0.0
    %77 = vmatprep.subr.mxu0 0.0
    %78 = vmatpush2.msra.mxu0 0.0
    %79 = vmatprep.subr.mxu0 0.0
    %80 = vmatpush2.msra.mxu0 0.0
    %81 = vmatprep.subr.mxu0 0.0
    %82 = vmatpush2.msra.mxu0 0.0
    %83 = vmatprep.subr.mxu0 0.0
    %84 = vmatpush2.msra.mxu0 0.0
    %85 = vmatprep.subr.mxu0 0.0
    %86 = vmatpush2.msra.mxu0 0.0
    %87 = vmatprep.subr.mxu0 0.0
    %88 = vmatpush2.msra.mxu0 0.0
    %89 = vmatprep.subr.mxu0 0.0
    %90 = vmatpush2.msra.mxu0 0.0
    %91 = vmatprep.subr.mxu0 0.0
    %92 = vmatpush2.msra.mxu0 0.0
    %93 = vmatprep.subr.mxu0 0.0
    %94 = vmatpush2.msra.mxu0 0.0
    %95 = vmatprep.subr.mxu0 0.0
    %96 = vmatpush2.msra.mxu0 0.0
    %97 = vmatprep.subr.mxu0 0.0
    %98 = vmatpush2.msra.mxu0 0.0
    %99 = vmatprep.subr.mxu0 0.0
    %100 = vmatpush2.msra.mxu0 0.0
    %101 = vmatprep.subr.mxu0 0.0
    %102 = vmatpush2.msra.mxu0 0.0
    %103 = vmatprep.mubr.f32.mxu0 0.0
    %104 = vmatmul.mubr.f32.gmra.mxu0 %v21
    %v105 = vpop.f32.mrf.mxu0
    %v106 = vadd.f32 0.0, %v105
    %v107 = vpop.f32.mrf.mxu0
    %108 = vdwg.mxu0
    %v109 = vmul.f32 %v106, 0.03125
    %vm110 = vcmask 31744
    %v112 = vsel %vm110, %v109, 0
    %vm114 = vcmask 1043456
    %v116 = vsel %vm114, %v38, 0
    %118 = vmatprep.subr.mxu0 0.0
    %119 = vmatpush1.msra.mxu0 0.0
    %120 = vmatprep.subr.mxu0 0.0
    %121 = vmatpush1.msra.mxu0 0.0
    %122 = vmatprep.subr.mxu0 0.0
    %123 = vmatpush1.msra.mxu0 0.0
    %124 = vmatprep.subr.mxu0 0.0
    %125 = vmatpush1.msra.mxu0 0.0
    %126 = vmatprep.subr.mxu0 0.0
    %127 = vmatpush1.msra.mxu0 0.0
    %128 = vmatprep.subr.mxu0 0.0
    %129 = vmatpush1.msra.mxu0 0.0
    %130 = vmatprep.subr.mxu0 0.0
    %131 = vmatpush1.msra.mxu0 0.0
    %132 = vmatprep.subr.mxu0 0.0
    %133 = vmatpush1.msra.mxu0 0.0
    %134 = vmatprep.subr.mxu0 0.0
    %135 = vmatpush1.msra.mxu0 0.0
    %136 = vmatprep.subr.mxu0 0.0
    %137 = vmatpush1.msra.mxu0 0.0
    %138 = vmatprep.subr.mxu0 0.0
    %139 = vmatpush1.msra.mxu0 0.0
    %140 = vmatprep.subr.mxu0 0.0
    %141 = vmatpush1.msra.mxu0 0.0
    %142 = vmatprep.subr.mxu0 0.0
    %143 = vmatpush1.msra.mxu0 0.0
    %144 = vmatprep.subr.mxu0 0.0
    %145 = vmatpush1.msra.mxu0 0.0
    %146 = vmatprep.subr.mxu0 0.0
    %147 = vmatpush1.msra.mxu0 0.0
    %148 = vmatprep.subr.mxu0 0.0
    %149 = vmatpush1.msra.mxu0 %v116
    %150 = vmatprep.subr.mxu0 0.0
    %151 = vmatpush2.msra.mxu0 0.0
    %152 = vmatprep.subr.mxu0 0.0
    %153 = vmatpush2.msra.mxu0 0.0
    %154 = vmatprep.subr.mxu0 0.0
    %155 = vmatpush2.msra.mxu0 0.0
    %156 = vmatprep.subr.mxu0 0.0
    %157 = vmatpush2.msra.mxu0 0.0
    %158 = vmatprep.subr.mxu0 0.0
    %159 = vmatpush2.msra.mxu0 0.0
    %160 = vmatprep.subr.mxu0 0.0
    %161 = vmatpush2.msra.mxu0 0.0
    %162 = vmatprep.subr.mxu0 0.0
    %163 = vmatpush2.msra.mxu0 0.0
    %164 = vmatprep.subr.mxu0 0.0
    %165 = vmatpush2.msra.mxu0 0.0
    %166 = vmatprep.subr.mxu0 0.0
    %167 = vmatpush2.msra.mxu0 0.0
    %168 = vmatprep.subr.mxu0 0.0
    %169 = vmatpush2.msra.mxu0 0.0
    %170 = vmatprep.subr.mxu0 0.0
    %171 = vmatpush2.msra.mxu0 0.0
    %172 = vmatprep.subr.mxu0 0.0
    %173 = vmatpush2.msra.mxu0 0.0
    %174 = vmatprep.subr.mxu0 0.0
    %175 = vmatpush2.msra.mxu0 0.0
    %176 = vmatprep.subr.mxu0 0.0
    %177 = vmatpush2.msra.mxu0 0.0
    %178 = vmatprep.subr.mxu0 0.0
    %179 = vmatpush2.msra.mxu0 0.0
    %180 = vmatprep.subr.mxu0 0.0
    %181 = vmatpush2.msra.mxu0 0.0
    %182 = vmatprep.mubr.f32.mxu0 0.0
    %183 = vmatmul.mubr.f32.gmra.mxu0 %v112
    %v184 = vpop.f32.mrf.mxu0
    %v185 = vadd.f32 0.0, %v184
    %v186 = vpop.f32.mrf.mxu0
    %187 = vdwg.mxu0
    %v188 = vsub.f32 %v21, %v185
    %v189 = vmul.f32 %v188, %v188
    %190 = vmatprep.subr.mxu0 0.0
    %191 = vmatpush1.msra.mxu0 %v37
    %192 = vmatprep.subr.mxu0 0.0
    %193 = vmatpush1.msra.mxu0 %v36
    %194 = vmatprep.subr.mxu0 0.0
    %195 = vmatpush1.msra.mxu0 %v35
    %196 = vmatprep.subr.mxu0 0.0
    %197 = vmatpush1.msra.mxu0 %v34
    %198 = vmatprep.subr.mxu0 0.0
    %199 = vmatpush1.msra.mxu0 %v33
    %200 = vmatprep.subr.mxu0 0.0
    %201 = vmatpush1.msra.mxu0 %v32
    %202 = vmatprep.subr.mxu0 0.0
    %203 = vmatpush1.msra.mxu0 %v31
    %204 = vmatprep.subr.mxu0 0.0
    %205 = vmatpush1.msra.mxu0 %v30
    %206 = vmatprep.subr.mxu0 0.0
    %207 = vmatpush1.msra.mxu0 %v29
    %208 = vmatprep.subr.mxu0 0.0
    %209 = vmatpush1.msra.mxu0 %v28
    %210 = vmatprep.subr.mxu0 0.0
    %211 = vmatpush1.msra.mxu0 %v27
    %212 = vmatprep.subr.mxu0 0.0
    %213 = vmatpush1.msra.mxu0 %v26
    %214 = vmatprep.subr.mxu0 0.0
    %215 = vmatpush1.msra.mxu0 %v25
    %216 = vmatprep.subr.mxu0 0.0
    %217 = vmatpush1.msra.mxu0 %v24
    %218 = vmatprep.subr.mxu0 0.0
    %219 = vmatpush1.msra.mxu0 %v23
    %220 = vmatprep.subr.mxu0 0.0
    %221 = vmatpush1.msra.mxu0 %v22
    %222 = vmatprep.subr.mxu0 0.0
    %223 = vmatpush2.msra.mxu0 0.0
    %224 = vmatprep.subr.mxu0 0.0
    %225 = vmatpush2.msra.mxu0 0.0
    %226 = vmatprep.subr.mxu0 0.0
    %227 = vmatpush2.msra.mxu0 0.0
    %228 = vmatprep.subr.mxu0 0.0
    %229 = vmatpush2.msra.mxu0 0.0
    %230 = vmatprep.subr.mxu0 0.0
    %231 = vmatpush2.msra.mxu0 0.0
    %232 = vmatprep.subr.mxu0 0.0
    %233 = vmatpush2.msra.mxu0 0.0
    %234 = vmatprep.subr.mxu0 0.0
    %235 = vmatpush2.msra.mxu0 0.0
    %236 = vmatprep.subr.mxu0 0.0
    %237 = vmatpush2.msra.mxu0 0.0
    %238 = vmatprep.subr.mxu0 0.0
    %239 = vmatpush2.msra.mxu0 0.0
    %240 = vmatprep.subr.mxu0 0.0
    %241 = vmatpush2.msra.mxu0 0.0
    %242 = vmatprep.subr.mxu0 0.0
    %243 = vmatpush2.msra.mxu0 0.0
    %244 = vmatprep.subr.mxu0 0.0
    %245 = vmatpush2.msra.mxu0 0.0
    %246 = vmatprep.subr.mxu0 0.0
    %247 = vmatpush2.msra.mxu0 0.0
    %248 = vmatprep.subr.mxu0 0.0
    %249 = vmatpush2.msra.mxu0 0.0
    %250 = vmatprep.subr.mxu0 0.0
    %251 = vmatpush2.msra.mxu0 0.0
    %252 = vmatprep.subr.mxu0 0.0
    %253 = vmatpush2.msra.mxu0 0.0
    %254 = vmatprep.mubr.f32.mxu0 0.0
    %255 = vmatmul.mubr.f32.gmra.mxu0 %v189
    %v256 = vpop.f32.mrf.mxu0
    %v257 = vadd.f32 0.0, %v256
    %v258 = vpop.f32.mrf.mxu0
    %259 = vdwg.mxu0
    %v260 = vmul.f32 %v257, 0.03125
    %v261 = vadd.f32 %v260, 1e-05
    %v262 = vrsqrt.pop %v261
    %v263 = vld [vmem:[%s1] sm:$0x1]
    %v264 = vld [vmem:[%s2] sm:$0x1]
    %v266 = vlaneseq
    %v267 = vshrl.u32 %v266, 7
    %v268 = vsub.s32 0, %v267
    %v269 = vrot.slane %v263, %v268
    %v271 = vmul.f32 %v38, %v269
    %v273 = vsel %vm110, %v262, 0
    %v276 = vsel %vm114, %v271, 0
    %278 = vmatprep.subr.mxu0 0.0
    %279 = vmatpush1.msra.mxu0 0.0
    %280 = vmatprep.subr.mxu0 0.0
    %281 = vmatpush1.msra.mxu0 0.0
    %282 = vmatprep.subr.mxu0 0.0
    %283 = vmatpush1.msra.mxu0 0.0
    %284 = vmatprep.subr.mxu0 0.0
    %285 = vmatpush1.msra.mxu0 0.0
    %286 = vmatprep.subr.mxu0 0.0
    %287 = vmatpush1.msra.mxu0 0.0
    %288 = vmatprep.subr.mxu0 0.0
    %289 = vmatpush1.msra.mxu0 0.0
    %290 = vmatprep.subr.mxu0 0.0
    %291 = vmatpush1.msra.mxu0 0.0
    %292 = vmatprep.subr.mxu0 0.0
    %293 = vmatpush1.msra.mxu0 0.0
    %294 = vmatprep.subr.mxu0 0.0
    %295 = vmatpush1.msra.mxu0 0.0
    %296 = vmatprep.subr.mxu0 0.0
    %297 = vmatpush1.msra.mxu0 0.0
    %298 = vmatprep.subr.mxu0 0.0
    %299 = vmatpush1.msra.mxu0 0.0
    %300 = vmatprep.subr.mxu0 0.0
    %301 = vmatpush1.msra.mxu0 0.0
    %302 = vmatprep.subr.mxu0 0.0
    %303 = vmatpush1.msra.mxu0 0.0
    %304 = vmatprep.subr.mxu0 0.0
    %305 = vmatpush1.msra.mxu0 0.0
    %306 = vmatprep.subr.mxu0 0.0
    %307 = vmatpush1.msra.mxu0 0.0
    %308 = vmatprep.subr.mxu0 0.0
    %309 = vmatpush1.msra.mxu0 %v276
    %310 = vmatprep.subr.mxu0 0.0
    %311 = vmatpush2.msra.mxu0 0.0
    %312 = vmatprep.subr.mxu0 0.0
    %313 = vmatpush2.msra.mxu0 0.0
    %314 = vmatprep.subr.mxu0 0.0
    %315 = vmatpush2.msra.mxu0 0.0
    %316 = vmatprep.subr.mxu0 0.0
    %317 = vmatpush2.msra.mxu0 0.0
    %318 = vmatprep.subr.mxu0 0.0
    %319 = vmatpush2.msra.mxu0 0.0
    %320 = vmatprep.subr.mxu0 0.0
    %321 = vmatpush2.msra.mxu0 0.0
    %322 = vmatprep.subr.mxu0 0.0
    %323 = vmatpush2.msra.mxu0 0.0
    %324 = vmatprep.subr.mxu0 0.0
    %325 = vmatpush2.msra.mxu0 0.0
    %326 = vmatprep.subr.mxu0 0.0
    %327 = vmatpush2.msra.mxu0 0.0
    %328 = vmatprep.subr.mxu0 0.0
    %329 = vmatpush2.msra.mxu0 0.0
    %330 = vmatprep.subr.mxu0 0.0
    %331 = vmatpush2.msra.mxu0 0.0
    %332 = vmatprep.subr.mxu0 0.0
    %333 = vmatpush2.msra.mxu0 0.0
    %334 = vmatprep.subr.mxu0 0.0
    %335 = vmatpush2.msra.mxu0 0.0
    %336 = vmatprep.subr.mxu0 0.0
    %337 = vmatpush2.msra.mxu0 0.0
    %338 = vmatprep.subr.mxu0 0.0
    %339 = vmatpush2.msra.mxu0 0.0
    %340 = vmatprep.subr.mxu0 0.0
    %341 = vmatpush2.msra.mxu0 0.0
    %342 = vmatprep.mubr.f32.mxu0 0.0
    %343 = vmatmul.mubr.f32.gmra.mxu0 %v273
    %v344 = vpop.f32.mrf.mxu0
    %v345 = vadd.f32 0.0, %v344
    %v346 = vpop.f32.mrf.mxu0
    %347 = vdwg.mxu0
    %v348 = vmul.f32 %v188, %v345
    %v350 = vlaneseq
    %v351 = vshrl.u32 %v350, 7
    %v352 = vsub.s32 0, %v351
    %v353 = vrot.slane %v264, %v352
    %v355 = vadd.f32 %v348, %v353
    %356 = vst [vmem:[#allocation2] sm:$0xff] %v355
    // Predicated region
    $region22: #{tpu_custom_call.1} parent=1 // pred_check
      _
    $region23: #{tpu_custom_call.1} parent=1 // pred_check_branch
      %358 = sbr.rel (0) target = $region25
    $region24: #{tpu_custom_call.1} parent=1 // pred_region
      %s360 = ssub.s32 128, 128
      %361 = vsyncadd [#allocation3], %s360
      %s363 = sshll.u32 [#allocation2], 4
      %s364 = int_to_ptr.vmem [resolvable:$true] %s363
      %366 = dma.vmem_to_hbm [thread:$0]  %s364, 128, %s5, [#allocation3]
    $region25: #{tpu_custom_call.1} parent=1 // pred_fallthru
      _
    // Predicated region
    $region26: #{tpu_custom_call.1} parent=1 // pred_check
      _
    $region27: #{tpu_custom_call.1} parent=1 // pred_check_branch
      %368 = sbr.rel (0) target = $region29
    $region28: #{tpu_custom_call.1} parent=1 // pred_region
      %369 = dma.done [#allocation3], 128
    $region29: #{tpu_custom_call.1} parent=1 // pred_fallthru
      _
    %370 = vsyncpa [#allocation3], 1

</llo_original>
